<compile_context>
chip_gen: v5e
topology: v5e:2x2
jax: 0.10.0
libtpu: 0.0.40
codegen_flags: <defaults>
</compile_context>

<pallas_src>
import functools
import math

import jax
import jax.numpy as jnp
from jax.experimental import pallas as pl
from jax.experimental.pallas import tpu as pltpu

_GOLDEN = 0x9E3779B9          # odd 32-bit constant, decorrelates the 2nd draw
_INV_2_24 = 1.0 / (1 << 24)


def _fmix32(x):
    """lowbias32 integer mixer (bijective avalanche on uint32)."""
    x = x ^ (x >> 16)
    x = x * jnp.uint32(0x7FEB352D)
    x = x ^ (x >> 15)
    x = x * jnp.uint32(0x846CA68B)
    x = x ^ (x >> 16)
    return x


def _patch_gaussian_kernel(ints_ref, scale_ref, img_ref, out_ref, *, H, W, tile_h):
    """ints_ref : SMEM int32[5]   = [start_y, end_y, start_x, end_x, seed]
       scale_ref: SMEM float32[1] = [scale]
       img_ref  : VMEM (tile_h, W) tile of one channel, native dtype
       out_ref  : VMEM (tile_h, W) float32
    """
    start_y = ints_ref[0]
    end_y = ints_ref[1]
    start_x = ints_ref[2]
    end_x = ints_ref[3]
    seed = ints_ref[4]

    c = pl.program_id(0)
    y0 = pl.program_id(1) * tile_h

    # Does this row tile overlap the patch rows at all?  (scalar compares)
    intersects = jnp.logical_and(start_y < y0 + tile_h, end_y > y0)

    @pl.when(jnp.logical_not(intersects))
    def _copy_only():
        # Common case: pure streaming copy (cast only) -> HBM-bound.
        out_ref[...] = img_ref[...].astype(out_ref.dtype)

    @pl.when(intersects)
    def _apply_patch_noise():
        # Patch predicate: two cheap 1-D compares broadcast together.
        h = y0 + jax.lax.broadcasted_iota(jnp.int32, (tile_h, 1), 0)   # rows
        w = jax.lax.broadcasted_iota(jnp.int32, (1, W), 1)             # lanes
        row_in = jnp.logical_and(h >= start_y, h < end_y)              # (tile_h, 1)
        col_in = jnp.logical_and(w >= start_x, w < end_x)              # (1, W)
        inside = jnp.logical_and(row_in, col_in)                       # (tile_h, W)

        # Counter-based PRNG: unique per-pixel counter -> hash -> Box-Muller.
        # Deterministic given `seed`, zero HBM noise traffic, portable.
        # TODO(synk): not bit-identical to torch.randn's RNG stream.
        idx = ((c * H + h) * W + w).astype(jnp.uint32)
        key = seed.astype(jnp.uint32)
        b1 = _fmix32(idx ^ key)
        b2 = _fmix32(b1 ^ jnp.uint32(_GOLDEN))
        u1 = ((b1 >> 8).astype(jnp.int32).astype(jnp.float32) + 1.0) * _INV_2_24  # (0, 1]
        u2 = (b2 >> 8).astype(jnp.int32).astype(jnp.float32) * _INV_2_24          # [0, 1)
        normal = jnp.sqrt(-2.0 * jnp.log(u1)) * jnp.cos((2.0 * math.pi) * u2)

        img32 = img_ref[...].astype(jnp.float32)
        # Reference math inside the patch: clamp(img/255 + scale*noise, 0, 1)*255.
        noisy = jnp.clip(img32 * (1.0 / 255.0) + scale_ref[0] * normal,
                         0.0, 1.0) * 255.0
        # Outside the patch pixels are returned exactly unchanged.
        out_ref[...] = jnp.where(inside, noisy, img32).astype(out_ref.dtype)


def _pick_tile_h(C, H, W):
    """Row-tile size: a multiple of 8 that divides H (full H if H % 8 != 0).

    Targets ~2 MiB f32 output blocks so (in + out) x 2 pipeline buffers stay
    well under v5e's 16 MiB scoped-VMEM default, and tries to keep at least
    two grid steps so v7x's second TensorCore has work.
    """
    if H % 8 != 0:
        return H                                   # full-dim block, no padding
    target_rows = max(8, (2 << 20) // (4 * max(W, 1)))
    divisors = [d for d in range(8, H + 1, 8) if H % d == 0]
    fitting = [d for d in divisors if d <= target_rows] or divisors[:1]
    tile_h = max(fitting)
    if C * (H // tile_h) < 2:                      # give the 2nd core a step
        halves = [d for d in divisors if H // d >= 2]
        if halves:
            tile_h = max(halves)
    return tile_h


def patch_gaussian_pallas(img, ints, scale):
    """img: (C, H, W) real dtype; ints: (5,) int32; scale: (1,) float32."""
    C, H, W = img.shape
    tile_h = _pick_tile_h(C, H, W)
    grid = (C, H // tile_h)
    kernel = functools.partial(_patch_gaussian_kernel, H=H, W=W, tile_h=tile_h)
    return pl.pallas_call(
        kernel,
        out_shape=jax.ShapeDtypeStruct((C, H, W), jnp.float32),
        grid_spec=pl.GridSpec(
            grid=grid,
            in_specs=[
                pl.BlockSpec(memory_space=pltpu.MemorySpace.SMEM),      # ints
                pl.BlockSpec(memory_space=pltpu.MemorySpace.SMEM),      # scale
                pl.BlockSpec((None, tile_h, W), lambda c, j: (c, j, 0)),  # img
            ],
            out_specs=pl.BlockSpec((None, tile_h, W), lambda c, j: (c, j, 0)),
        ),
        compiler_params=pltpu.CompilerParams(
            dimension_semantics=("parallel", "parallel")),
    )(ints, scale, img)


class PatchGaussianPallas:
    """Mirror of the PyTorch PatchGaussian module (forward only)."""

    def __init__(self, patch_size, max_scale, sample_up_to=False):
        self.patch_size = patch_size
        self.max_scale = max_scale
        self.sample_up_to = sample_up_to
        self.attack_name = "patch_gaussian"
        self.epoch = 0

    def forward(self, img, key):
        C, H, W = img.shape
        k_ps, k_x, k_y, k_scale, k_seed = jax.random.split(key, 5)

        # Patch size (optionally sampled), kept as a traced int32: no host sync.
        # (The reference draws but never uses the sampled size; we honour the
        # documented intent of sample_up_to.)
        if self.sample_up_to:
            patch_size = jax.random.randint(k_ps, (), 1, self.patch_size + 1)
        else:
            patch_size = jnp.int32(self.patch_size)
        half_lo = patch_size // 2            # floor(patch_size / 2)
        half_hi = patch_size - half_lo       # ceil(patch_size / 2)

        # Random patch centre, same distribution as np.random.randint(0, dim + 1).
        x = jax.random.randint(k_x, (), 0, W + 1)
        y = jax.random.randint(k_y, (), 0, H + 1)
        start_x = jnp.maximum(x - half_lo, 0)
        end_x = jnp.minimum(x + half_hi, W)
        start_y = jnp.maximum(y - half_lo, 0)
        end_y = jnp.minimum(y + half_hi, H)
        seed = jax.random.randint(k_seed, (), 0, jnp.iinfo(jnp.int32).max)
        ints = jnp.stack([start_y, end_y, start_x, end_x, seed]).astype(jnp.int32)

        # scale = max_scale * Uniform(0, 1)
        scale = (self.max_scale *
                 jax.random.uniform(k_scale, (), jnp.float32)).reshape(1)

        # Stream the image in its native dtype; the kernel casts per tile.
        return patch_gaussian_pallas(img, ints, scale)

    __call__ = forward

    def set_epoch(self, epoch):
        self.epoch = epoch


if __name__ == "__main__":
    key = jax.random.PRNGKey(0)
    k_img, k_fwd = jax.random.split(key)

    # Image in [0, 255], CHW layout, small shapes.
    C, H, W = 4, 16, 16
    img = jax.random.uniform(k_img, (C, H, W), jnp.float32) * 255.0

    attack = PatchGaussianPallas(patch_size=8, max_scale=1.0, sample_up_to=False)
    out = jax.block_until_ready(attack(img, k_fwd))

    assert out.shape == (C, H, W)
    assert out.dtype == jnp.float32
    assert bool(jnp.all(out >= 0.0)) and bool(jnp.all(out <= 255.0))
    # Only pixels inside the (at most 8x8 per channel) patch may change.
    n_changed = int(jnp.sum(out != img))
    assert n_changed <= C * 8 * 8
    # Pixels outside the patch must be returned bit-exactly.
    assert bool(jnp.any(out == img))

    print("KERNEL_OK")
</pallas_src>

<mosaic_0001>
module attributes {stable_mosaic.version = 11 : i64} {
  func.func @_patch_gaussian_kernel(%arg0: i32, %arg1: i32, %arg2: memref<5xi32, #tpu.memory_space<smem>>, %arg3: memref<1xf32, #tpu.memory_space<smem>>, %arg4: memref<1x16x16xf32, #tpu.memory_space<vmem>>, %arg5: memref<1x16x16xf32, #tpu.memory_space<vmem>>) attributes {dimension_semantics = [#tpu.dimension_semantics<parallel>, #tpu.dimension_semantics<parallel>], iteration_bounds = array<i64: 4, 1>, scalar_prefetch = 0 : i64, scratch_operands = 0 : i64, tpu.core_type = #tpu.core_type<tc>, window_params = [{transform_indices = @transform_0, window_bounds = array<i64: 5>}, {transform_indices = @transform_1, window_bounds = array<i64: 1>}, {transform_indices = @transform_2, window_bounds = array<i64: 1, 16, 16>}, {transform_indices = @transform_3, window_bounds = array<i64: 1, 16, 16>}]} {
    %c0 = arith.constant 0 : index
    %0 = memref.load %arg2[%c0] : memref<5xi32, #tpu.memory_space<smem>>
    %c1 = arith.constant 1 : index
    %1 = memref.load %arg2[%c1] : memref<5xi32, #tpu.memory_space<smem>>
    %c2 = arith.constant 2 : index
    %2 = memref.load %arg2[%c2] : memref<5xi32, #tpu.memory_space<smem>>
    %c3 = arith.constant 3 : index
    %3 = memref.load %arg2[%c3] : memref<5xi32, #tpu.memory_space<smem>>
    %c4 = arith.constant 4 : index
    %4 = memref.load %arg2[%c4] : memref<5xi32, #tpu.memory_space<smem>>
    %c16_i32 = arith.constant 16 : i32
    %5 = arith.muli %arg1, %c16_i32 : i32
    %c16_i32_0 = arith.constant 16 : i32
    %6 = arith.addi %5, %c16_i32_0 : i32
    %7 = arith.cmpi slt, %0, %6 : i32
    %8 = arith.cmpi sgt, %1, %5 : i32
    %9 = arith.andi %7, %8 : i1
    %true = arith.constant true
    %10 = arith.xori %9, %true : i1
    %11 = arith.extui %10 : i1 to i32
    %c0_i32 = arith.constant 0 : i32
    %12 = arith.cmpi ne, %11, %c0_i32 : i32
    scf.if %12 {
      %c0_2 = arith.constant 0 : index
      %c0_3 = arith.constant 0 : index
      %c0_4 = arith.constant 0 : index
      %15 = vector.load %arg4[%c0_2, %c0_3, %c0_4] : memref<1x16x16xf32, #tpu.memory_space<vmem>>, vector<1x16x16xf32>
      %16 = vector.shape_cast %15 : vector<1x16x16xf32> to vector<16x16xf32>
      %c0_5 = arith.constant 0 : index
      %c0_6 = arith.constant 0 : index
      %c0_7 = arith.constant 0 : index
      %17 = vector.load %arg5[%c0_5, %c0_6, %c0_7] : memref<1x16x16xf32, #tpu.memory_space<vmem>>, vector<1x16x16xf32>
      %18 = vector.shape_cast %17 : vector<1x16x16xf32> to vector<16x16xf32>
      %19 = vector.shape_cast %16 : vector<16x16xf32> to vector<1x16x16xf32>
      tpu.vector_store %arg5[%c0_5, %c0_6, %c0_7], %19 {strides = array<i32>} : memref<1x16x16xf32, #tpu.memory_space<vmem>>, vector<1x16x16xf32>,
    } else {
    }
    %13 = arith.extui %9 : i1 to i32
    %c0_i32_1 = arith.constant 0 : i32
    %14 = arith.cmpi ne, %13, %c0_i32_1 : i32
    scf.if %14 {
      %15 = tpu.iota {dimensions = array<i32: 0>} : vector<16x1xi32>
      %16 = vector.broadcast %5 : i32 to vector<16x1xi32>
      %17 = arith.addi %16, %15 : vector<16x1xi32>
      %18 = tpu.iota {dimensions = array<i32: 1>} : vector<1x16xi32>
      %19 = vector.broadcast %0 : i32 to vector<16x1xi32>
      %20 = arith.cmpi sge, %17, %19 : vector<16x1xi32>
      %21 = vector.broadcast %1 : i32 to vector<16x1xi32>
      %22 = arith.cmpi slt, %17, %21 : vector<16x1xi32>
      %23 = arith.andi %20, %22 : vector<16x1xi1>
      %24 = vector.broadcast %2 : i32 to vector<1x16xi32>
      %25 = arith.cmpi sge, %18, %24 : vector<1x16xi32>
      %26 = vector.broadcast %3 : i32 to vector<1x16xi32>
      %27 = arith.cmpi slt, %18, %26 : vector<1x16xi32>
      %28 = arith.andi %25, %27 : vector<1x16xi1>
      %29 = vector.broadcast %23 : vector<16x1xi1> to vector<16x16xi1>
      %30 = vector.broadcast %28 : vector<1x16xi1> to vector<16x16xi1>
      %31 = arith.andi %29, %30 : vector<16x16xi1>
      %c16_i32_2 = arith.constant 16 : i32
      %32 = arith.muli %arg0, %c16_i32_2 : i32
      %33 = vector.broadcast %32 : i32 to vector<16x1xi32>
      %34 = arith.addi %33, %17 : vector<16x1xi32>
      %c16_i32_3 = arith.constant 16 : i32
      %35 = vector.broadcast %c16_i32_3 : i32 to vector<16x1xi32>
      %36 = arith.muli %34, %35 : vector<16x1xi32>
      %37 = vector.broadcast %36 : vector<16x1xi32> to vector<16x16xi32>
      %38 = vector.broadcast %18 : vector<1x16xi32> to vector<16x16xi32>
      %39 = arith.addi %37, %38 : vector<16x16xi32>
      %40 = vector.broadcast %4 : i32 to vector<16x16xi32>
      %41 = arith.xori %39, %40 : vector<16x16xi32>
      %c16_i32_4 = arith.constant 16 : i32
      %42 = vector.broadcast %c16_i32_4 : i32 to vector<16x16xi32>
      %43 = arith.shrui %41, %42 : vector<16x16xi32>
      %44 = arith.xori %41, %43 : vector<16x16xi32>
      %c2146121005_i32 = arith.constant 2146121005 : i32
      %45 = vector.broadcast %c2146121005_i32 : i32 to vector<16x16xi32>
      %46 = arith.muli %44, %45 : vector<16x16xi32>
      %c15_i32 = arith.constant 15 : i32
      %47 = vector.broadcast %c15_i32 : i32 to vector<16x16xi32>
      %48 = arith.shrui %46, %47 : vector<16x16xi32>
      %49 = arith.xori %46, %48 : vector<16x16xi32>
      %c-2073254261_i32 = arith.constant -2073254261 : i32
      %50 = vector.broadcast %c-2073254261_i32 : i32 to vector<16x16xi32>
      %51 = arith.muli %49, %50 : vector<16x16xi32>
      %c16_i32_5 = arith.constant 16 : i32
      %52 = vector.broadcast %c16_i32_5 : i32 to vector<16x16xi32>
      %53 = arith.shrui %51, %52 : vector<16x16xi32>
      %54 = arith.xori %51, %53 : vector<16x16xi32>
      %c-1640531527_i32 = arith.constant -1640531527 : i32
      %55 = vector.broadcast %c-1640531527_i32 : i32 to vector<16x16xi32>
      %56 = arith.xori %54, %55 : vector<16x16xi32>
      %c16_i32_6 = arith.constant 16 : i32
      %57 = vector.broadcast %c16_i32_6 : i32 to vector<16x16xi32>
      %58 = arith.shrui %56, %57 : vector<16x16xi32>
      %59 = arith.xori %56, %58 : vector<16x16xi32>
      %c2146121005_i32_7 = arith.constant 2146121005 : i32
      %60 = vector.broadcast %c2146121005_i32_7 : i32 to vector<16x16xi32>
      %61 = arith.muli %59, %60 : vector<16x16xi32>
      %c15_i32_8 = arith.constant 15 : i32
      %62 = vector.broadcast %c15_i32_8 : i32 to vector<16x16xi32>
      %63 = arith.shrui %61, %62 : vector<16x16xi32>
      %64 = arith.xori %61, %63 : vector<16x16xi32>
      %c-2073254261_i32_9 = arith.constant -2073254261 : i32
      %65 = vector.broadcast %c-2073254261_i32_9 : i32 to vector<16x16xi32>
      %66 = arith.muli %64, %65 : vector<16x16xi32>
      %c16_i32_10 = arith.constant 16 : i32
      %67 = vector.broadcast %c16_i32_10 : i32 to vector<16x16xi32>
      %68 = arith.shrui %66, %67 : vector<16x16xi32>
      %69 = arith.xori %66, %68 : vector<16x16xi32>
      %c8_i32 = arith.constant 8 : i32
      %70 = vector.broadcast %c8_i32 : i32 to vector<16x16xi32>
      %71 = arith.shrui %54, %70 : vector<16x16xi32>
      %72 = arith.sitofp %71 : vector<16x16xi32> to vector<16x16xf32>
      %cst = arith.constant 1.000000e+00 : f32
      %73 = vector.broadcast %cst : f32 to vector<16x16xf32>
      %74 = arith.addf %72, %73 : vector<16x16xf32>
      %cst_11 = arith.constant 5.96046448E-8 : f32
      %75 = vector.broadcast %cst_11 : f32 to vector<16x16xf32>
      %76 = arith.mulf %74, %75 : vector<16x16xf32>
      %c8_i32_12 = arith.constant 8 : i32
      %77 = vector.broadcast %c8_i32_12 : i32 to vector<16x16xi32>
      %78 = arith.shrui %69, %77 : vector<16x16xi32>
      %79 = arith.sitofp %78 : vector<16x16xi32> to vector<16x16xf32>
      %cst_13 = arith.constant 5.96046448E-8 : f32
      %80 = vector.broadcast %cst_13 : f32 to vector<16x16xf32>
      %81 = arith.mulf %79, %80 : vector<16x16xf32>
      %82 = math.log %76 : vector<16x16xf32>
      %cst_14 = arith.constant -2.000000e+00 : f32
      %83 = vector.broadcast %cst_14 : f32 to vector<16x16xf32>
      %84 = arith.mulf %83, %82 : vector<16x16xf32>
      %85 = math.sqrt %84 : vector<16x16xf32>
      %cst_15 = arith.constant 6.28318548 : f32
      %86 = vector.broadcast %cst_15 : f32 to vector<16x16xf32>
      %87 = arith.mulf %86, %81 : vector<16x16xf32>
      %88 = math.cos %87 : vector<16x16xf32>
      %89 = arith.mulf %85, %88 : vector<16x16xf32>
      %c0_16 = arith.constant 0 : index
      %c0_17 = arith.constant 0 : index
      %c0_18 = arith.constant 0 : index
      %90 = vector.load %arg4[%c0_16, %c0_17, %c0_18] : memref<1x16x16xf32, #tpu.memory_space<vmem>>, vector<1x16x16xf32>
      %91 = vector.shape_cast %90 : vector<1x16x16xf32> to vector<16x16xf32>
      %cst_19 = arith.constant 0.00392156886 : f32
      %92 = vector.broadcast %cst_19 : f32 to vector<16x16xf32>
      %93 = arith.mulf %91, %92 : vector<16x16xf32>
      %c0_20 = arith.constant 0 : index
      %94 = memref.load %arg3[%c0_20] : memref<1xf32, #tpu.memory_space<smem>>
      %95 = vector.broadcast %94 : f32 to vector<16x16xf32>
      %96 = arith.mulf %95, %89 : vector<16x16xf32>
      %97 = arith.addf %93, %96 : vector<16x16xf32>
      %cst_21 = arith.constant 0.000000e+00 : f32
      %cst_22 = arith.constant 1.000000e+00 : f32
      %98 = vector.broadcast %cst_21 : f32 to vector<16x16xf32>
      %99 = arith.maximumf %98, %97 : vector<16x16xf32>
      %100 = vector.broadcast %cst_22 : f32 to vector<16x16xf32>
      %101 = arith.minimumf %100, %99 : vector<16x16xf32>
      %cst_23 = arith.constant 2.550000e+02 : f32
      %102 = vector.broadcast %cst_23 : f32 to vector<16x16xf32>
      %103 = arith.mulf %101, %102 : vector<16x16xf32>
      %104 = arith.select %31, %103, %91 : vector<16x16xi1>, vector<16x16xf32>
      %c0_24 = arith.constant 0 : index
      %c0_25 = arith.constant 0 : index
      %c0_26 = arith.constant 0 : index
      %105 = vector.load %arg5[%c0_24, %c0_25, %c0_26] : memref<1x16x16xf32, #tpu.memory_space<vmem>>, vector<1x16x16xf32>
      %106 = vector.shape_cast %105 : vector<1x16x16xf32> to vector<16x16xf32>
      %107 = vector.shape_cast %104 : vector<16x16xf32> to vector<1x16x16xf32>
      tpu.vector_store %arg5[%c0_24, %c0_25, %c0_26], %107 {strides = array<i32>} : memref<1x16x16xf32, #tpu.memory_space<vmem>>, vector<1x16x16xf32>,
    } else {
    }
    return
  }
  func.func @transform_0(%arg0: i32, %arg1: i32) -> i32 {
    %c0_i32 = arith.constant 0 : i32
    %c0_i32_0 = arith.constant 0 : i32
    return %c0_i32 : i32
  }
  func.func @transform_1(%arg0: i32, %arg1: i32) -> i32 {
    %c0_i32 = arith.constant 0 : i32
    %c0_i32_0 = arith.constant 0 : i32
    return %c0_i32 : i32
  }
  func.func @transform_2(%arg0: i32, %arg1: i32) -> (i32, i32, i32) {
    %c0_i32 = arith.constant 0 : i32
    %c0_i32_0 = arith.constant 0 : i32
    return %arg0, %arg1, %c0_i32 : i32, i32, i32
  }
  func.func @transform_3(%arg0: i32, %arg1: i32) -> (i32, i32, i32) {
    %c0_i32 = arith.constant 0 : i32
    %c0_i32_0 = arith.constant 0 : i32
    return %arg0, %arg1, %c0_i32 : i32, i32, i32
  }
}

</mosaic_0001>

<llo_original>
// kernel: tpu_custom_call.1
$region0: #{tpu_custom_call.1}
  #allocation0 [shape = 'u32[]', space=smem, size = 0x4, offset = 0x4, fixed_abs, tag = 'smem constant byte address 0x4 - core index']
  #allocation1 [shape = 'u32[72,128]{1,0:T(1,128)}', space=vmem, size = 0x9000, scoped, tag = 'internal scratch']
  #allocation2 [shape = 'f32[1]{0:T(128)S(6)}', space=smem, size = 0x200, scoped, tag = 'scoped memory for tpu_custom_call.1']
  %s0 = inlined_call_operand.vmem [shape: s32[5], index: 0, kind: input, shape index: {}]
  %s1 = inlined_call_operand.<no memory space> [shape: f32[1], index: 1, kind: input, shape index: {}]
  %s2 = inlined_call_operand.hbm [shape: f32[4,16,16], index: 2, kind: input, shape index: {}]
  %s3 = inlined_call_operand.hbm [shape: f32[4,16,16], index: 3, kind: output, shape index: {}]
  %s4 = sld [smem:[#allocation0]]
  $region61: #{tpu_custom_call.1} parent=0
    _
  %s6 = ssub.s32 1, %s4
  %s7 = scalar_select 0, %s6, %s4
  %8 = sst [smem:[#allocation2]] %s1
  $region1: #{tpu_custom_call.1} parent=0
    #allocation3 [shape = 'u8[512]{0}', space=smem, size = 0x200, scoped, tag = 'input window, operand 0, single buffered']
    #allocation4 [shape = 's32[2]{0}', space=sflag, size = 0x8, scoped, tag = 'scoped memory for tpu_custom_call.1']
    #allocation5 [shape = 's32[2]{0}', space=sflag, size = 0x8, scoped, tag = 'scoped memory for tpu_custom_call.1']
    #allocation6 [shape = 's32[2]{0}', space=sflag, size = 0x8, scoped, tag = 'scoped memory for tpu_custom_call.1']
    #allocation7 [shape = 'u8[16384]{0}', space=vmem, size = 0x4000, scoped, tag = 'input window, operand 2']
    #allocation8 [shape = 'u8[16384]{0}', space=vmem, size = 0x4000, scoped, tag = 'output window, operand 0']
    %9 = vsyncpa [#allocation6], 0
    %10 = vsyncpa [#allocation4], 0
    %s11 = scalar_lea.sflag [#allocation4], 1
    %12 = vsyncpa %s11, 0
    %13 = vsyncpa [#allocation5], 0
    %s14 = scalar_lea.sflag [#allocation5], 1
    %15 = vsyncpa %s14, 0
    loop: start=0, step=1, limit=6
    $region2: #{tpu_custom_call.1} parent=1 // loop_pre_header
      _
    $region3: #{tpu_custom_call.1} parent=1 // loop_header
      %s17 = sphi 0, %s21
      %p18 = scmp.ge.s32.totalorder %s17, 6
      %s24 = sphi 0, %s36
      %s25 = sphi 0, %s32
      %s26 = sphi 0, %s24
      %s27 = sphi 0, %s25
      %s28 = sphi 0, %s26
      %s29 = sphi 0, %s27
      %s37 = sphi 0, %s37
      %s39 = sphi 0, %s37
      %s40 = sphi 0, %s39
      %s54 = sphi 0, %s40
      %s58 = sphi 0, %s58
      %s60 = sphi 0, %s58
      %s61 = sphi 0, %s60
      %s75 = sphi 0, %s61
      %s83 = sphi 0, %s85
      %s86 = sphi 0, %s83
      %s87 = sphi 0, %s86
      %s103 = sphi 0, %s87
      %s111 = sphi 0, %s113
      %s114 = sphi 0, %s111
      %s115 = sphi 0, %s114
      %s131 = sphi 0, %s115
    $region4: #{tpu_custom_call.1} parent=1 // loop_header_branch
      %20 = sbr.rel (%p18) target = $region8
    $region5: #{tpu_custom_call.1} parent=1 // loop_body
      %s22 = ssub.s32 %s17, 1
      %s23 = ssub.s32 %s17, 2
      %s30 = sadd.s32 1, %s25
      %p31 = scmp.ge.s32.totalorder %s30, 1
      %s32 = scalar_select %p31, 0, %s30
      %s33 = sadd.s32 1, %s24
      %s34 = scalar_select %p31, %s33, %s24
      %p35 = scmp.ge.s32.totalorder %s34, 4
      %s36 = scalar_select %p35, 0, %s34
      %s38 = sadd.s32 %s37, 1
      %p41 = scmp.eq.s32.totalorder %s17, 3
      %p42 = scmp.ne.s32.totalorder %s37, %s39
      %p43 = scmp.eq.s32.totalorder %s17, 0
      %p44 = por %p42, %p43
      %p45 = scmp.ne.s32.totalorder %s37, %s39
      %p46 = scmp.eq.s32.totalorder %s22, 3
      %p47 = por %p45, %p46
      %p48 = scmp.ne.s32.totalorder %s39, %s40
      %p49 = scmp.eq.s32.totalorder %s22, 0
      %p50 = por %p48, %p49
      %p51 = scmp.ne.s32.totalorder %s39, %s40
      %p52 = scmp.eq.s32.totalorder %s23, 3
      %p53 = por %p51, %p52
      %p55 = scmp.ne.s32.totalorder %s40, %s54
      %p56 = scmp.eq.s32.totalorder %s23, 0
      %p57 = por %p55, %p56
      %s59 = sadd.s32 %s58, 1
      %p62 = scmp.eq.s32.totalorder %s17, 3
      %p63 = scmp.ne.s32.totalorder %s58, %s60
      %p64 = scmp.eq.s32.totalorder %s17, 0
      %p65 = por %p63, %p64
      %p66 = scmp.ne.s32.totalorder %s58, %s60
      %p67 = scmp.eq.s32.totalorder %s22, 3
      %p68 = por %p66, %p67
      %p69 = scmp.ne.s32.totalorder %s60, %s61
      %p70 = scmp.eq.s32.totalorder %s22, 0
      %p71 = por %p69, %p70
      %p72 = scmp.ne.s32.totalorder %s60, %s61
      %p73 = scmp.eq.s32.totalorder %s23, 3
      %p74 = por %p72, %p73
      %p76 = scmp.ne.s32.totalorder %s61, %s75
      %p77 = scmp.eq.s32.totalorder %s23, 0
      %p78 = por %p76, %p77
      %s79 = ssub.s32 %s24, %s36
      %s80 = ssub.s32 %s25, %s32
      %s81 = sor.u32 %s79, %s80
      %p82 = scmp.eq.s32.totalorder %s81, 0
      %s84 = sadd.s32 %s83, 1
      %s85 = scalar_select %p82, %s83, %s84
      %p88 = pneg %p82
      %p89 = scmp.eq.s32.totalorder %s17, 3
      %p90 = por %p88, %p89
      %p91 = scmp.ne.s32.totalorder %s83, %s86
      %p92 = scmp.eq.s32.totalorder %s17, 0
      %p93 = por %p91, %p92
      %p94 = scmp.ne.s32.totalorder %s83, %s86
      %p95 = scmp.eq.s32.totalorder %s22, 3
      %p96 = por %p94, %p95
      %p97 = scmp.ne.s32.totalorder %s86, %s87
      %p98 = scmp.eq.s32.totalorder %s22, 0
      %p99 = por %p97, %p98
      %p100 = scmp.ne.s32.totalorder %s86, %s87
      %p101 = scmp.eq.s32.totalorder %s23, 3
      %p102 = por %p100, %p101
      %p104 = scmp.ne.s32.totalorder %s87, %s103
      %p105 = scmp.eq.s32.totalorder %s23, 0
      %p106 = por %p104, %p105
      %s107 = ssub.s32 %s24, %s36
      %s108 = ssub.s32 %s25, %s32
      %s109 = sor.u32 %s107, %s108
      %p110 = scmp.eq.s32.totalorder %s109, 0
      %s112 = sadd.s32 %s111, 1
      %s113 = scalar_select %p110, %s111, %s112
      %p116 = pneg %p110
      %p117 = scmp.eq.s32.totalorder %s17, 3
      %p118 = por %p116, %p117
      %p119 = scmp.ne.s32.totalorder %s111, %s114
      %p120 = scmp.eq.s32.totalorder %s17, 0
      %p121 = por %p119, %p120
      %p122 = scmp.ne.s32.totalorder %s111, %s114
      %p123 = scmp.eq.s32.totalorder %s22, 3
      %p124 = por %p122, %p123
      %p125 = scmp.ne.s32.totalorder %s114, %s115
      %p126 = scmp.eq.s32.totalorder %s22, 0
      %p127 = por %p125, %p126
      %p128 = scmp.ne.s32.totalorder %s114, %s115
      %p129 = scmp.eq.s32.totalorder %s23, 3
      %p130 = por %p128, %p129
      %p132 = scmp.ne.s32.totalorder %s115, %s131
      %p133 = scmp.eq.s32.totalorder %s23, 0
      %p134 = por %p132, %p133
      %p135 = scmp.le.s32.totalorder 1, %s17
      %p136 = scmp.lt.s32.totalorder %s17, 5
      %p137 = pnand %p135, %p136
      %p138 = pneg %p137
      // Predicated region
      $region9: #{tpu_custom_call.1} parent=5 // pred_check
        _
      $region10: #{tpu_custom_call.1} parent=5 // pred_check_branch
        %140 = sbr.rel (%p137) target = $region12
      $region11: #{tpu_custom_call.1} parent=5 // pred_region
        %s141 = ssub.s32 %s17, 1
        // Predicated region
        $region13: #{tpu_custom_call.1} parent=11 // pred_check
          %p142 = pneg %p50
        $region14: #{tpu_custom_call.1} parent=11 // pred_check_branch
          %144 = sbr.rel (%p142) target = $region16
        $region15: #{tpu_custom_call.1} parent=11 // pred_region
          %146 = vsyncadd [#allocation6], 0
          %s148 = sshll.u32 %s0, 4
          %s149 = int_to_ptr.vmem [resolvable:$true] %s148
          %151 = dma.vmem_to_smem %s149, 16, [#allocation3], [#allocation6]
        $region16: #{tpu_custom_call.1} parent=11 // pred_fallthru
          _
        // Predicated region
        $region17: #{tpu_custom_call.1} parent=11 // pred_check
          %p152 = pneg %p71
        $region18: #{tpu_custom_call.1} parent=11 // pred_check_branch
          %154 = sbr.rel (%p152) target = $region20
        $region19: #{tpu_custom_call.1} parent=11 // pred_region
          _
        $region20: #{tpu_custom_call.1} parent=11 // pred_fallthru
          _
      $region12: #{tpu_custom_call.1} parent=5 // pred_fallthru
        _
      %p155 = scmp.lt.s32.totalorder %s17, 4
      // Predicated region
      $region21: #{tpu_custom_call.1} parent=5 // pred_check
        %p156 = pneg %p155
      $region22: #{tpu_custom_call.1} parent=5 // pred_check_branch
        %158 = sbr.rel (%p156) target = $region24
      $region23: #{tpu_custom_call.1} parent=5 // pred_region
        // Predicated region
        $region25: #{tpu_custom_call.1} parent=23 // pred_check
          %p159 = pneg %p93
        $region26: #{tpu_custom_call.1} parent=23 // pred_check_branch
          %161 = sbr.rel (%p159) target = $region28
        $region27: #{tpu_custom_call.1} parent=23 // pred_region
          %s162 = sand.u32 %s83, 1
          %s163 = scalar_lea.sflag [#allocation4], %s162
          %s164 = sand.u32 %s83, 1
          %s165 = smul.addr %s164, 16
          %s166 = scalar_lea.vmem [#allocation7], %s165
          %s167 = smul.u32 2, %s25
          %169 = vsyncadd %s163, 0
          %s170 = smul.addr %s24, 2
          %s171 = sadd.s32 %s167, %s170
          %s172 = smul.addr %s171, 8
          %s173 = scalar_lea.hbm %s2, %s172
          %s174 = sshll.u32 %s173, 4
          %s175 = int_to_ptr.hbm [resolvable:$true] %s174
          %s176 = sshll.u32 %s166, 4
          %s177 = int_to_ptr.vmem [resolvable:$true] %s176
          %182 = dma.hbm_to_vmem [thread:$0]  %s175, 256, %s177, %s163, 128, 128, 8
        $region28: #{tpu_custom_call.1} parent=23 // pred_fallthru
          _
      $region24: #{tpu_custom_call.1} parent=5 // pred_fallthru
        _
      %p183 = scmp.le.s32.totalorder 1, %s17
      %p184 = scmp.lt.s32.totalorder %s17, 5
      %p185 = pnand %p183, %p184
      %p186 = pneg %p185
      // Predicated region
      $region29: #{tpu_custom_call.1} parent=5 // pred_check
        _
      $region30: #{tpu_custom_call.1} parent=5 // pred_check_branch
        %188 = sbr.rel (%p185) target = $region32
      $region31: #{tpu_custom_call.1} parent=5 // pred_region
        %s189 = ssub.s32 %s17, 1
        // Predicated region
        $region33: #{tpu_custom_call.1} parent=31 // pred_check
          %p190 = pneg %p50
        $region34: #{tpu_custom_call.1} parent=31 // pred_check_branch
          %192 = sbr.rel (%p190) target = $region36
        $region35: #{tpu_custom_call.1} parent=31 // pred_region
          %194 = dma.done [#allocation6], 16
        $region36: #{tpu_custom_call.1} parent=31 // pred_fallthru
          _
        %s195 = sand.u32 %s86, 1
        %s196 = scalar_lea.sflag [#allocation4], %s195
        %s197 = sand.u32 %s86, 1
        %s198 = smul.addr %s197, 16
        %s199 = scalar_lea.vmem [#allocation7], %s198
        // Predicated region
        $region37: #{tpu_custom_call.1} parent=31 // pred_check
          %p200 = pneg %p99
        $region38: #{tpu_custom_call.1} parent=31 // pred_check_branch
          %202 = sbr.rel (%p200) target = $region40
        $region39: #{tpu_custom_call.1} parent=31 // pred_region
          %204 = dma.done %s196, 256
        $region40: #{tpu_custom_call.1} parent=31 // pred_fallthru
          _
        %205 = sfence
        %p206 = pneg %p50
        %p207 = pneg %p47
        %p208 = pneg %p71
        %p209 = pneg %p68
        %s210 = sand.u32 %s86, 1
        %s211 = scalar_lea.sflag [#allocation4], %s210
        %s212 = sand.u32 %s86, 1
        %s213 = smul.addr %s212, 16
        %s214 = scalar_lea.vmem [#allocation7], %s213
        %p215 = pneg %p99
        %p216 = pneg %p96
        %p217 = pneg %p127
        %p218 = pneg %p124
        %s219 = sand.u32 %s114, 1
        %s220 = scalar_lea.sflag [#allocation5], %s219
        %s221 = sand.u32 %s114, 1
        %s222 = smul.addr %s221, 16
        %s223 = scalar_lea.vmem [#allocation8], %s222
        %s224 = smul.u32 2, %s27
        %s225 = smul.u32 2, %s27
        %s226 = sld [smem:[#allocation3]]
        %s227 = sld [smem:[#allocation3 + $0x1]]
        %s228 = sld [smem:[#allocation3 + $0x2]]
        %s229 = sld [smem:[#allocation3 + $0x3]]
        %s230 = sld [smem:[#allocation3 + $0x4]]
        %s231 = smul.u32 %s27, 16
        %s232 = sadd.s32 %s231, 16
        %p233 = scmp.lt.s32.totalorder %s226, %s232
        %p234 = scmp.gt.s32.totalorder %s227, %s231
        %p235 = pnand %p233, %p234
        %p236 = pneg %p235
        // Predicated region
        $region41: #{tpu_custom_call.1} parent=31 // pred_check
          _
        $region42: #{tpu_custom_call.1} parent=31 // pred_check_branch
          %238 = sbr.rel (%p235) target = $region44
        $region43: #{tpu_custom_call.1} parent=31 // pred_region
          %v239 = vlaneseq
          %v240 = vshrl.u32 %v239, 7
          %v241 = vadd.s32 %v240, 8
          %v242 = vstv %s231
          %v243 = vadd.s32 %v242, %v240
          %v244 = vadd.s32 %v242, %v241
          %v245 = vlaneseq
          %v246 = vand.u32 %v245, 127
          %v247 = vstv %s226
          %vm248 = vcmp.ge.s32.totalorder %v243, %v247
          %vm249 = vcmp.ge.s32.totalorder %v244, %v247
          %v250 = vstv %s227
          %vm251 = vcmp.lt.s32.totalorder %v243, %v250
          %vm252 = vcmp.lt.s32.totalorder %v244, %v250
          %vm253 = vmand %vm248, %vm251
          %vm254 = vmand %vm249, %vm252
          %v255 = vstv %s228
          %vm256 = vcmp.ge.s32.totalorder %v246, %v255
          %v257 = vstv %s229
          %vm258 = vcmp.lt.s32.totalorder %v246, %v257
          %vm259 = vmand %vm256, %vm258
          %v260 = vsel %vm253, 1, 0
          %v261 = vsel %vm254, 1, 0
          %vm262 = vcmp.eq.s32.totalorder %v260, 1
          %vm263 = vcmp.eq.s32.totalorder %v261, 1
          %v264 = vsel %vm259, 1, 0
          %vm265 = vcmp.eq.s32.totalorder %v264, 1
          %vm266 = vmand %vm262, %vm265
          %vm267 = vmand %vm263, %vm265
          %s268 = smul.u32 %s26, 16
          %v269 = vstv %s268
          %v270 = vadd.s32 %v269, %v243
          %v271 = vadd.s32 %v269, %v244
          %v272 = vmul.u32 %v270, 16
          %v273 = vmul.u32 %v271, 16
          %v274 = vadd.s32 %v272, %v246
          %v275 = vadd.s32 %v273, %v246
          %v276 = vstv %s230
          %v277 = vxor.u32 %v274, %v276
          %v278 = vxor.u32 %v275, %v276
          %v279 = vshrl.u32 %v277, 16
          %v280 = vshrl.u32 %v278, 16
          %v281 = vxor.u32 %v277, %v279
          %v282 = vxor.u32 %v278, %v280
          %v283 = vmul.u32 %v281, 2146121005
          %v284 = vmul.u32 %v282, 2146121005
          %v285 = vshrl.u32 %v283, 15
          %v286 = vshrl.u32 %v284, 15
          %v287 = vxor.u32 %v283, %v285
          %v288 = vxor.u32 %v284, %v286
          %v289 = vmul.u32 %v287, 2221713035
          %v290 = vmul.u32 %v288, 2221713035
          %v291 = vshrl.u32 %v289, 16
          %v292 = vshrl.u32 %v290, 16
          %v293 = vxor.u32 %v289, %v291
          %v294 = vxor.u32 %v290, %v292
          %v295 = vxor.u32 %v293, 2654435769
          %v296 = vxor.u32 %v294, 2654435769
          %v297 = vshrl.u32 %v295, 16
          %v298 = vshrl.u32 %v296, 16
          %v299 = vxor.u32 %v295, %v297
          %v300 = vxor.u32 %v296, %v298
          %v301 = vmul.u32 %v299, 2146121005
          %v302 = vmul.u32 %v300, 2146121005
          %v303 = vshrl.u32 %v301, 15
          %v304 = vshrl.u32 %v302, 15
          %v305 = vxor.u32 %v301, %v303
          %v306 = vxor.u32 %v302, %v304
          %v307 = vmul.u32 %v305, 2221713035
          %v308 = vmul.u32 %v306, 2221713035
          %v309 = vshrl.u32 %v307, 16
          %v310 = vshrl.u32 %v308, 16
          %v311 = vxor.u32 %v307, %v309
          %v312 = vxor.u32 %v308, %v310
          %v313 = vshrl.u32 %v293, 8
          %v314 = vshrl.u32 %v294, 8
          %v315 = vcvt.s32.f32 %v313
          %v316 = vcvt.s32.f32 %v314
          %v317 = vadd.f32 %v315, 1.0
          %v318 = vadd.f32 %v316, 1.0
          %v319 = vmul.f32 %v317, 5.9604645e-08
          %v320 = vmul.f32 %v318, 5.9604645e-08
          %v321 = vshrl.u32 %v311, 8
          %v322 = vshrl.u32 %v312, 8
          %v323 = vcvt.s32.f32 %v321
          %v324 = vcvt.s32.f32 %v322
          %v325 = vmul.f32 %v323, 5.9604645e-08
          %v326 = vmul.f32 %v324, 5.9604645e-08
          %v327 = vlog2.pop %v319
          %v328 = vmul.f32 %v327, 0.6931472
          %v329 = vlog2.pop %v320
          %v330 = vmul.f32 %v329, 0.6931472
          %v331 = vmul.f32 %v328, -2.0
          %v332 = vmul.f32 %v330, -2.0
          %v333 = vrsqrt.pop %v331
          %v334 = vmul.f32 %v333, %v331
          %v335 = vmul.f32 %v334, %v333
          %v336 = vmul.f32 0.5, %v335
          %v337 = vsub.f32 1.5, %v336
          %v338 = vmul.f32 %v333, %v337
          %v339 = vmul.f32 %v331, %v338
          %vm340 = vcmp.eq.f32.partialorder %v331, inf
          %v341 = vsel %vm340, %v331, %v339
          %vm342 = vcmp.eq.f32.partialorder %v331, 0.0
          %v343 = vand.u32 %v331, 2147483648
          %v344 = vsel %vm342, %v343, %v341
          %v345 = vrsqrt.pop %v332
          %v346 = vmul.f32 %v345, %v332
          %v347 = vmul.f32 %v346, %v345
          %v348 = vmul.f32 0.5, %v347
          %v349 = vsub.f32 1.5, %v348
          %v350 = vmul.f32 %v345, %v349
          %v351 = vmul.f32 %v332, %v350
          %vm352 = vcmp.eq.f32.partialorder %v332, inf
          %v353 = vsel %vm352, %v332, %v351
          %vm354 = vcmp.eq.f32.partialorder %v332, 0.0
          %v355 = vand.u32 %v332, 2147483648
          %v356 = vsel %vm354, %v355, %v353
          %v357 = vmul.f32 %v325, 6.2831855
          %v358 = vmul.f32 %v326, 6.2831855
          %v359 = vand.u32 2147483647, %v357
          %vm360 = vcmp.le.f32.partialorder %v359, 0.7853982
          %vm361 = vcmp.lt.s32.totalorder %v357, 0
          %v362 = vand.u32 %v357, 2139095040
          %v363 = vshrl.u32 %v362, 23
          %v364 = vsub.s32 %v363, 127
          %v365 = vand.u32 2147483647, %v357
          %v366 = vand.u32 %v365, 8388607
          %v367 = vor.u32 %v366, 8388608
          %v368 = vsub.s32 0, %v367
          %v369 = vadd.s32 %v364, 1
          %vm370 = vcmp.gt.s32.totalorder %v369, 0
          %v371 = vsel %vm370, %v369, 0
          %v372 = vshrl.u32 %v371, 5
          %v373 = vand.u32 %v371, 31
          %v374 = vsub.s32 32, %v373
          %v375 = vshrl.u32 683565275, %v374
          %v376 = vshll.u32 683565275, %v373
          %v377 = vshrl.u32 2475754826, %v374
          %v378 = vor.u32 %v376, %v377
          %v379 = vshll.u32 2475754826, %v373
          %v380 = vshrl.u32 2131351028, %v374
          %v381 = vor.u32 %v379, %v380
          %v382 = vshll.u32 2131351028, %v373
          %v383 = vshrl.u32 2102212464, %v374
          %v384 = vor.u32 %v382, %v383
          %v385 = vshll.u32 2102212464, %v373
          %v386 = vshrl.u32 920167782, %v374
          %v387 = vor.u32 %v385, %v386
          %v388 = vshll.u32 920167782, %v373
          %v389 = vshrl.u32 1326507024, %v374
          %v390 = vor.u32 %v388, %v389
          %vm391 = vcmp.lt.s32.totalorder %v372, 1
          %vm392 = vcmp.lt.s32.totalorder %v372, 2
          %vm393 = vcmp.lt.s32.totalorder %v372, 3
          %vm394 = vcmp.lt.s32.totalorder %v372, 4
          %v395 = vsel %vm391, %v375, %v378
          %v396 = vsel %vm394, %v384, 2102212464
          %v397 = vsel %vm393, %v381, %v396
          %v398 = vsel %vm392, %v395, %v397
          %v399 = vsel %vm391, %v378, %v381
          %v400 = vsel %vm394, %v387, 920167782
          %v401 = vsel %vm393, %v384, %v400
          %v402 = vsel %vm392, %v399, %v401
          %v403 = vsel %vm391, %v381, %v384
          %v404 = vsel %vm394, %v390, 1326507024
          %v405 = vsel %vm393, %v387, %v404
          %v406 = vsel %vm392, %v403, %v405
          %v407 = vshll.u32 %v367, 8
          %v408 = vand.u32 %v407, 65535
          %v409 = vshrl.u32 %v407, 16
          %v410 = vand.u32 %v406, 65535
          %v411 = vshrl.u32 %v406, 16
          %v412 = vmul.u32 %v408, %v410
          %v413 = vmul.u32 %v408, %v411
          %v414 = vmul.u32 %v409, %v410
          %v415 = vmul.u32 %v409, %v411
          %v416 = vshll.u32 %v413, 16
          %v417 = vshrl.u32 %v413, 16
          %v418 = vshll.u32 %v414, 16
          %v419 = vshrl.u32 %v414, 16
          %vm420 = vc.u32 %v412, %v416
          %v421 = vsel %vm420, 1, 0
          %v422 = vadd.s32 %v412, %v416
          %v423 = vadd.s32 %v415, %v421
          %vm424 = vc.u32 %v422, %v418
          %v425 = vsel %vm424, 1, 0
          %v426 = vadd.s32 %v422, %v418
          %v427 = vadd.s32 %v423, %v425
          %v428 = vadd.s32 %v427, %v417
          %v429 = vadd.s32 %v428, %v419
          %v430 = vand.u32 %v407, 65535
          %v431 = vshrl.u32 %v407, 16
          %v432 = vand.u32 %v402, 65535
          %v433 = vshrl.u32 %v402, 16
          %v434 = vmul.u32 %v430, %v432
          %v435 = vmul.u32 %v430, %v433
          %v436 = vmul.u32 %v431, %v432
          %v437 = vmul.u32 %v431, %v433
          %v438 = vshll.u32 %v435, 16
          %v439 = vshrl.u32 %v435, 16
          %v440 = vshll.u32 %v436, 16
          %v441 = vshrl.u32 %v436, 16
          %vm442 = vc.u32 %v434, %v438
          %v443 = vsel %vm442, 1, 0
          %v444 = vadd.s32 %v434, %v438
          %v445 = vadd.s32 %v437, %v443
          %vm446 = vc.u32 %v444, %v440
          %v447 = vsel %vm446, 1, 0
          %v448 = vadd.s32 %v444, %v440
          %v449 = vadd.s32 %v445, %v447
          %v450 = vadd.s32 %v449, %v439
          %v451 = vadd.s32 %v450, %v441
          %v452 = vmul.u32 %v407, %v398
          %v453 = vadd.s32 %v429, %v448
          %vm454 = vc.u32 %v429, %v448
          %v455 = vadd.s32 %v451, 1
          %v456 = vsel %vm454, %v455, %v451
          %v457 = vadd.s32 %v452, %v456
          %v458 = vadd.s32 %v457, 536870912
          %v459 = vshrl.u32 %v458, 30
          %v460 = vshll.u32 %v459, 30
          %v461 = vsub.s32 %v457, %v460
          %vm462 = vcmp.lt.s32.totalorder %v461, 0
          %v463 = vsub.s32 0, %v461
          %v464 = vsel %vm462, %v463, %v461
          %v465 = vclz %v464
          %v466 = vsub.s32 %v465, 2
          %vm467 = vcmp.gt.s32.totalorder 0, %v466
          %v468 = vsel %vm467, 0, %v466
          %v469 = vsub.s32 32, %v468
          %v470 = vshll.u32 %v461, %v468
          %v471 = vshrl.u32 %v453, %v469
          %v472 = vor.u32 %v470, %v471
          %v473 = vsub.s32 4294967266, %v468
          %v474 = vadd.s32 %v473, 127
          %v475 = vshll.u32 %v474, 23
          %v476 = vor.u32 4788187, %v475
          %v477 = vand.u32 2147483647, %v476
          %v479 = vcvt.s32.f32 %v472
          %v480 = vmul.f32 %v479, %v477
          %v481 = vxor.u32 %v480, 2147483648
          %v482 = vsel %vm361, %v481, %v480
          %v483 = vsub.s32 4, %v459
          %v484 = vsel %vm361, %v483, %v459
          %v485 = vsel %vm360, %v357, %v482
          %v486 = vsel %vm360, 0, %v484
          %v487 = vmul.f32 %v485, %v485
          %v488 = vmul.f32 %v487, -0.001358992
          %v489 = vadd.f32 %v488, 0.041655596
          %v490 = vmul.f32 %v487, %v489
          %v491 = vadd.f32 %v490, -0.4999988
          %v492 = vmul.f32 %v487, %v491
          %v493 = vadd.f32 1.0, %v492
          %v494 = vmul.f32 %v485, %v485
          %v495 = vmul.f32 %v494, -0.00019511016
          %v496 = vadd.f32 %v495, 0.008332121
          %v497 = vmul.f32 %v494, %v496
          %v498 = vadd.f32 %v497, -0.16666654
          %v499 = vmul.f32 %v494, %v498
          %v500 = vadd.f32 %v499, 1.0
          %v501 = vmul.f32 %v500, %v485
          %vm502 = vweird.f32 %v357
          %v503 = vand.u32 %v486, 3
          %vm504 = vcmp.lt.s32.totalorder %v503, 2
          %vm505 = vcmp.eq.s32.totalorder %v503, 0
          %v506 = vxor.u32 %v501, 2147483648
          %v507 = vsel %vm505, %v493, %v506
          %vm508 = vcmp.eq.s32.totalorder %v503, 2
          %v509 = vxor.u32 %v493, 2147483648
          %v510 = vsel %vm508, %v509, %v501
          %v511 = vsel %vm504, %v507, %v510
          %v512 = vsel %vm502, nan, %v511
          %v513 = vand.u32 2147483647, %v358
          %vm514 = vcmp.le.f32.partialorder %v513, 0.7853982
          %vm515 = vcmp.lt.s32.totalorder %v358, 0
          %v516 = vand.u32 %v358, 2139095040
          %v517 = vshrl.u32 %v516, 23
          %v518 = vsub.s32 %v517, 127
          %v519 = vand.u32 2147483647, %v358
          %v520 = vand.u32 %v519, 8388607
          %v521 = vor.u32 %v520, 8388608
          %v522 = vsub.s32 0, %v521
          %v523 = vadd.s32 %v518, 1
          %vm524 = vcmp.gt.s32.totalorder %v523, 0
          %v525 = vsel %vm524, %v523, 0
          %v526 = vshrl.u32 %v525, 5
          %v527 = vand.u32 %v525, 31
          %v528 = vsub.s32 32, %v527
          %v529 = vshrl.u32 683565275, %v528
          %v530 = vshll.u32 683565275, %v527
          %v531 = vshrl.u32 2475754826, %v528
          %v532 = vor.u32 %v530, %v531
          %v533 = vshll.u32 2475754826, %v527
          %v534 = vshrl.u32 2131351028, %v528
          %v535 = vor.u32 %v533, %v534
          %v536 = vshll.u32 2131351028, %v527
          %v537 = vshrl.u32 2102212464, %v528
          %v538 = vor.u32 %v536, %v537
          %v539 = vshll.u32 2102212464, %v527
          %v540 = vshrl.u32 920167782, %v528
          %v541 = vor.u32 %v539, %v540
          %v542 = vshll.u32 920167782, %v527
          %v543 = vshrl.u32 1326507024, %v528
          %v544 = vor.u32 %v542, %v543
          %vm545 = vcmp.lt.s32.totalorder %v526, 1
          %vm546 = vcmp.lt.s32.totalorder %v526, 2
          %vm547 = vcmp.lt.s32.totalorder %v526, 3
          %vm548 = vcmp.lt.s32.totalorder %v526, 4
          %v549 = vsel %vm545, %v529, %v532
          %v550 = vsel %vm548, %v538, 2102212464
          %v551 = vsel %vm547, %v535, %v550
          %v552 = vsel %vm546, %v549, %v551
          %v553 = vsel %vm545, %v532, %v535
          %v554 = vsel %vm548, %v541, 920167782
          %v555 = vsel %vm547, %v538, %v554
          %v556 = vsel %vm546, %v553, %v555
          %v557 = vsel %vm545, %v535, %v538
          %v558 = vsel %vm548, %v544, 1326507024
          %v559 = vsel %vm547, %v541, %v558
          %v560 = vsel %vm546, %v557, %v559
          %v561 = vshll.u32 %v521, 8
          %v562 = vand.u32 %v561, 65535
          %v563 = vshrl.u32 %v561, 16
          %v564 = vand.u32 %v560, 65535
          %v565 = vshrl.u32 %v560, 16
          %v566 = vmul.u32 %v562, %v564
          %v567 = vmul.u32 %v562, %v565
          %v568 = vmul.u32 %v563, %v564
          %v569 = vmul.u32 %v563, %v565
          %v570 = vshll.u32 %v567, 16
          %v571 = vshrl.u32 %v567, 16
          %v572 = vshll.u32 %v568, 16
          %v573 = vshrl.u32 %v568, 16
          %vm574 = vc.u32 %v566, %v570
          %v575 = vsel %vm574, 1, 0
          %v576 = vadd.s32 %v566, %v570
          %v577 = vadd.s32 %v569, %v575
          %vm578 = vc.u32 %v576, %v572
          %v579 = vsel %vm578, 1, 0
          %v580 = vadd.s32 %v576, %v572
          %v581 = vadd.s32 %v577, %v579
          %v582 = vadd.s32 %v581, %v571
          %v583 = vadd.s32 %v582, %v573
          %v584 = vand.u32 %v561, 65535
          %v585 = vshrl.u32 %v561, 16
          %v586 = vand.u32 %v556, 65535
          %v587 = vshrl.u32 %v556, 16
          %v588 = vmul.u32 %v584, %v586
          %v589 = vmul.u32 %v584, %v587
          %v590 = vmul.u32 %v585, %v586
          %v591 = vmul.u32 %v585, %v587
          %v592 = vshll.u32 %v589, 16
          %v593 = vshrl.u32 %v589, 16
          %v594 = vshll.u32 %v590, 16
          %v595 = vshrl.u32 %v590, 16
          %vm596 = vc.u32 %v588, %v592
          %v597 = vsel %vm596, 1, 0
          %v598 = vadd.s32 %v588, %v592
          %v599 = vadd.s32 %v591, %v597
          %vm600 = vc.u32 %v598, %v594
          %v601 = vsel %vm600, 1, 0
          %v602 = vadd.s32 %v598, %v594
          %v603 = vadd.s32 %v599, %v601
          %v604 = vadd.s32 %v603, %v593
          %v605 = vadd.s32 %v604, %v595
          %v606 = vmul.u32 %v561, %v552
          %v607 = vadd.s32 %v583, %v602
          %vm608 = vc.u32 %v583, %v602
          %v609 = vadd.s32 %v605, 1
          %v610 = vsel %vm608, %v609, %v605
          %v611 = vadd.s32 %v606, %v610
          %v612 = vadd.s32 %v611, 536870912
          %v613 = vshrl.u32 %v612, 30
          %v614 = vshll.u32 %v613, 30
          %v615 = vsub.s32 %v611, %v614
          %vm616 = vcmp.lt.s32.totalorder %v615, 0
          %v617 = vsub.s32 0, %v615
          %v618 = vsel %vm616, %v617, %v615
          %v619 = vclz %v618
          %v620 = vsub.s32 %v619, 2
          %vm621 = vcmp.gt.s32.totalorder 0, %v620
          %v622 = vsel %vm621, 0, %v620
          %v623 = vsub.s32 32, %v622
          %v624 = vshll.u32 %v615, %v622
          %v625 = vshrl.u32 %v607, %v623
          %v626 = vor.u32 %v624, %v625
          %v627 = vsub.s32 4294967266, %v622
          %v628 = vadd.s32 %v627, 127
          %v629 = vshll.u32 %v628, 23
          %v630 = vor.u32 4788187, %v629
          %v631 = vand.u32 2147483647, %v630
          %v633 = vcvt.s32.f32 %v626
          %v634 = vmul.f32 %v633, %v631
          %v635 = vxor.u32 %v634, 2147483648
          %v636 = vsel %vm515, %v635, %v634
          %v637 = vsub.s32 4, %v613
          %v638 = vsel %vm515, %v637, %v613
          %v639 = vsel %vm514, %v358, %v636
          %v640 = vsel %vm514, 0, %v638
          %v641 = vmul.f32 %v639, %v639
          %v642 = vmul.f32 %v641, -0.001358992
          %v643 = vadd.f32 %v642, 0.041655596
          %v644 = vmul.f32 %v641, %v643
          %v645 = vadd.f32 %v644, -0.4999988
          %v646 = vmul.f32 %v641, %v645
          %v647 = vadd.f32 1.0, %v646
          %v648 = vmul.f32 %v639, %v639
          %v649 = vmul.f32 %v648, -0.00019511016
          %v650 = vadd.f32 %v649, 0.008332121
          %v651 = vmul.f32 %v648, %v650
          %v652 = vadd.f32 %v651, -0.16666654
          %v653 = vmul.f32 %v648, %v652
          %v654 = vadd.f32 %v653, 1.0
          %v655 = vmul.f32 %v654, %v639
          %vm656 = vweird.f32 %v358
          %v657 = vand.u32 %v640, 3
          %vm658 = vcmp.lt.s32.totalorder %v657, 2
          %vm659 = vcmp.eq.s32.totalorder %v657, 0
          %v660 = vxor.u32 %v655, 2147483648
          %v661 = vsel %vm659, %v647, %v660
          %vm662 = vcmp.eq.s32.totalorder %v657, 2
          %v663 = vxor.u32 %v647, 2147483648
          %v664 = vsel %vm662, %v663, %v655
          %v665 = vsel %vm658, %v661, %v664
          %v666 = vsel %vm656, nan, %v665
          %v667 = vmul.f32 %v344, %v512
          %v668 = vmul.f32 %v356, %v666
          %v669 = vld [vmem:[%s199] sm:$0xff]
          %v670 = vld [vmem:[%s199 + $0x8] sm:$0xff]
          %v671 = vmul.f32 %v669, 0.003921569
          %v672 = vmul.f32 %v670, 0.003921569
          %s673 = sld [smem:[#allocation2]]
          %v674 = vstv %s673
          %v675 = vmul.f32 %v674, %v667
          %v676 = vmul.f32 %v674, %v668
          %v677 = vadd.f32 %v671, %v675
          %v678 = vadd.f32 %v672, %v676
          %v679 = vmax.f32 %v677, 0.0
          %v680 = vmax.f32 %v678, 0.0
          %v681 = vmin.f32 %v679, 1.0
          %v682 = vmin.f32 %v680, 1.0
          %v683 = vmul.f32 %v681, 255.0
          %v684 = vmul.f32 %v682, 255.0
          %v685 = vsel %vm266, %v683, %v669
          %v686 = vsel %vm267, %v684, %v670
          %vm687 = vcmask 130048
          %688 = vst.msk [vmem:[%s223] sm:$0xff] %vm687, %v685
          %689 = vst.msk [vmem:[%s223 + $0x8] sm:$0xff] %vm687, %v686
        $region44: #{tpu_custom_call.1} parent=31 // pred_fallthru
          _
        // Predicated region
        $region45: #{tpu_custom_call.1} parent=31 // pred_check
          %p690 = pneg %p235
        $region46: #{tpu_custom_call.1} parent=31 // pred_check_branch
          %692 = sbr.rel (%p690) target = $region48
        $region47: #{tpu_custom_call.1} parent=31 // pred_region
          %v693 = vld [vmem:[%s199] sm:$0xff]
          %v694 = vld [vmem:[%s199 + $0x8] sm:$0xff]
          %vm695 = vcmask 130048
          %696 = vst.msk [vmem:[%s223] sm:$0xff] %vm695, %v693
          %697 = vst.msk [vmem:[%s223 + $0x8] sm:$0xff] %vm695, %v694
        $region48: #{tpu_custom_call.1} parent=31 // pred_fallthru
          _
        %s698 = sand.u32 %s114, 1
        %s699 = scalar_lea.sflag [#allocation5], %s698
        %s700 = sand.u32 %s114, 1
        %s701 = smul.addr %s700, 16
        %s702 = scalar_lea.vmem [#allocation8], %s701
        // Predicated region
        $region49: #{tpu_custom_call.1} parent=31 // pred_check
          %p703 = pneg %p124
        $region50: #{tpu_custom_call.1} parent=31 // pred_check_branch
          %705 = sbr.rel (%p703) target = $region52
        $region51: #{tpu_custom_call.1} parent=31 // pred_region
          %s706 = smul.u32 2, %s27
          %708 = vsyncadd %s699, 0
          %s709 = smul.addr %s26, 2
          %s710 = sadd.s32 %s706, %s709
          %s711 = smul.addr %s710, 8
          %s712 = scalar_lea.hbm %s3, %s711
          %s713 = sshll.u32 %s702, 4
          %s714 = int_to_ptr.vmem [resolvable:$true] %s713
          %s715 = sshll.u32 %s712, 4
          %s716 = int_to_ptr.hbm [resolvable:$true] %s715
          %721 = dma.vmem_to_hbm [thread:$0]  %s714, 256, %s716, %s699, 128, 128, 8
        $region52: #{tpu_custom_call.1} parent=31 // pred_fallthru
          _
      $region32: #{tpu_custom_call.1} parent=5 // pred_fallthru
        _
      %p722 = scmp.le.s32.totalorder 2, %s17
      // Predicated region
      $region53: #{tpu_custom_call.1} parent=5 // pred_check
        %p723 = pneg %p722
      $region54: #{tpu_custom_call.1} parent=5 // pred_check_branch
        %725 = sbr.rel (%p723) target = $region56
      $region55: #{tpu_custom_call.1} parent=5 // pred_region
        %s726 = ssub.s32 %s17, 2
        // Predicated region
        $region57: #{tpu_custom_call.1} parent=55 // pred_check
          %p727 = pneg %p130
        $region58: #{tpu_custom_call.1} parent=55 // pred_check_branch
          %729 = sbr.rel (%p727) target = $region60
        $region59: #{tpu_custom_call.1} parent=55 // pred_region
          %s730 = sand.u32 %s115, 1
          %s731 = scalar_lea.sflag [#allocation5], %s730
          %s732 = sand.u32 %s115, 1
          %s733 = smul.addr %s732, 16
          %s734 = scalar_lea.vmem [#allocation8], %s733
          %736 = dma.done %s731, 256
        $region60: #{tpu_custom_call.1} parent=55 // pred_fallthru
          _
      $region56: #{tpu_custom_call.1} parent=5 // pred_fallthru
        _
    $region6: #{tpu_custom_call.1} parent=1 // loop_footer
      %s21 = sadd.s32 1, %s17
    $region7: #{tpu_custom_call.1} parent=1 // loop_footer_branch
      %16 = sbr.rel target = $region3
    $region8: #{tpu_custom_call.1} parent=1 // loop_exit
      _
    %737 = vsyncpa [#allocation4], 1
    %s738 = scalar_lea.sflag [#allocation4], 1
    %739 = vsyncpa %s738, 1
    %740 = vsyncpa [#allocation5], 1
    %s741 = scalar_lea.sflag [#allocation5], 1
    %742 = vsyncpa %s741, 1
    %743 = vsyncpa [#allocation6], 1
    %s744 = scalar_lea.sflag [#allocation6], 1
    %745 = vsyncpa %s744, 1

</llo_original>
